<compile_context>
chip_gen: v7x
topology: tpu7x:2x2x1
jax: 0.10.0
libtpu: 0.0.40
codegen_flags: <defaults>
</compile_context>

<pallas_src>
import functools

import jax
import jax.numpy as jnp
from jax.experimental import pallas as pl
from jax.experimental.pallas import tpu as pltpu


def _cdiv(a: int, b: int) -> int:
    return -(-a // b)


def _round_up(n: int, m: int) -> int:
    return _cdiv(n, m) * m


def _choose_tile(batch: int, max_tile: int) -> int:
    """Pick a lane-dense batch tile (multiple of 128).

    - capped at `max_tile` (VMEM-safe on v7x's 64 MiB),
    - >= 2 grid blocks whenever there is enough work, so the "parallel" grid
      axis can shard across v7x's 2 TensorCores,
    - sized from ceil(B/nblocks) so batch padding stays small (no full-tile
      padding waste once tiles are tens of thousands of lanes wide).
    """
    b128 = _round_up(batch, 128)
    min_blocks = 2 if b128 >= 256 else 1
    nblk = max(_cdiv(b128, max_tile), min_blocks)
    return _round_up(_cdiv(b128, nblk), 128)


def bpnn_kernel(x_ref, w1_ref, b1_ref, w2_ref, b2_ref, o_ref):
    # x_ref : (8, T)   feature-major batch tile (features zero-padded 6 -> 8)
    # w1_ref: (32, 8)  fc1 weight, zero-padded along 'in'   -- resident
    # b1_ref: (32, 1)  fc1 bias as a column                 -- resident
    # w2_ref: (32, 1)  fc2 weight as a column               -- resident
    # b2_ref: (1,)     fc2 bias, scalar in SMEM
    # o_ref : (1, T)   lane-dense output tile
    #
    # fc1 on the MXU (f32 in / f32 acc). K=8 is tiny but the MXU is otherwise
    # idle and this frees the VALU (the previous all-VPU version was VALU-bound).
    h = jnp.dot(w1_ref[...], x_ref[...],
                preferred_element_type=jnp.float32)        # (32, T)
    h = jnp.maximum(h + b1_ref[...], 0.0)                  # bias + ReLU on VPU
    # fc2: VPU multiply + sublane (XLU) reduction over the 32 hidden units.
    y = jnp.sum(w2_ref[...] * h, axis=0, keepdims=True) + b2_ref[0]   # (1, T)
    o_ref[...] = y.astype(o_ref.dtype)


@functools.partial(jax.jit, static_argnames=("tb",))
def bpnn_forward(x, w1, b1, w2, b2, *, tb: int = 65536):
    """x: (B, 6); w1: (32, 6); b1: (32,); w2: (1, 32); b2: (1,). Returns (B, 1)."""
    B, F = x.shape
    assert F == 6

    tile = _choose_tile(B, tb)
    Bp = _round_up(B, tile)

    # Wrapper-side layout plumbing (single fused XLA transpose+pad): batch ->
    # lanes, features zero-padded to 8 so the MXU contraction dim is
    # sublane-aligned and padding contributes exact zeros.
    xT = jnp.pad(x.T.astype(jnp.float32), ((0, 2), (0, Bp - B)))    # (8, Bp)
    w1p = jnp.pad(w1.astype(jnp.float32), ((0, 0), (0, 2)))         # (32, 8)
    b1c = b1.reshape(32, 1).astype(jnp.float32)                     # (32, 1)
    w2c = w2.reshape(1, 32).T.astype(jnp.float32)                   # (32, 1)
    b2s = b2.reshape((1,)).astype(jnp.float32)                      # (1,) scalar

    grid = (Bp // tile,)
    yT = pl.pallas_call(
        bpnn_kernel,
        out_shape=jax.ShapeDtypeStruct((1, Bp), jnp.float32),
        grid=grid,
        in_specs=[
            pl.BlockSpec((8, tile), lambda i: (0, i)),      # x tile marches over batch
            pl.BlockSpec((32, 8), lambda i: (0, 0)),        # weights stay resident
            pl.BlockSpec((32, 1), lambda i: (0, 0)),
            pl.BlockSpec((32, 1), lambda i: (0, 0)),
            pl.BlockSpec(memory_space=pltpu.MemorySpace.SMEM),   # fc2 bias scalar
        ],
        out_specs=pl.BlockSpec((1, tile), lambda i: (0, i)),
        compiler_params=pltpu.CompilerParams(
            dimension_semantics=("parallel",),
            vmem_limit_bytes=48 * 1024 * 1024,   # safe for v7x's 64 MiB VMEM
        ),
    )(xT, w1p, b1c, w2c, b2s)

    # Back to the PyTorch (B, 1) convention; drop batch padding.
    return yT[0, :B].reshape(B, 1)


def init_params(key):
    # Deterministic init mimicking nn.Linear (uniform +/- 1/sqrt(fan_in)),
    # weights kept in the PyTorch (out_features, in_features) convention.
    k1, k2, k3, k4 = jax.random.split(key, 4)
    bound1 = 1.0 / jnp.sqrt(6.0)
    bound2 = 1.0 / jnp.sqrt(32.0)
    w1 = jax.random.uniform(k1, (32, 6), jnp.float32, -bound1, bound1)   # fc1.weight
    b1 = jax.random.uniform(k2, (32,), jnp.float32, -bound1, bound1)     # fc1.bias
    w2 = jax.random.uniform(k3, (1, 32), jnp.float32, -bound2, bound2)   # fc2.weight
    b2 = jax.random.uniform(k4, (1,), jnp.float32, -bound2, bound2)      # fc2.bias
    return w1, b1, w2, b2


if __name__ == "__main__":
    key = jax.random.PRNGKey(0)
    kx, kp = jax.random.split(key)
    B = 8
    x = jax.random.normal(kx, (B, 6), jnp.float32)
    w1, b1, w2, b2 = init_params(kp)

    out = bpnn_forward(x, w1, b1, w2, b2)
    jax.block_until_ready(out)

    # Pure-JAX reference with full-f32 contractions (PyTorch Linear semantics).
    h_ref = jnp.maximum(
        jnp.einsum("bi,oi->bo", x, w1, precision=jax.lax.Precision.HIGHEST) + b1, 0.0)
    ref = jnp.einsum("bo,po->bp", h_ref, w2,
                     precision=jax.lax.Precision.HIGHEST) + b2

    assert out.shape == (B, 1)
    assert jnp.allclose(out, ref, atol=1e-4, rtol=1e-4), "mismatch vs reference"
    print("KERNEL_OK")
</pallas_src>

<mosaic_0001>
module attributes {stable_mosaic.version = 11 : i64} {
  func.func @bpnn_kernel(%arg0: i32, %arg1: memref<8x128xf32, #tpu.memory_space<vmem>>, %arg2: memref<32x8xf32, #tpu.memory_space<vmem>>, %arg3: memref<32x1xf32, #tpu.memory_space<vmem>>, %arg4: memref<32x1xf32, #tpu.memory_space<vmem>>, %arg5: memref<1xf32, #tpu.memory_space<smem>>, %arg6: memref<1x128xf32, #tpu.memory_space<vmem>>) attributes {dimension_semantics = [#tpu.dimension_semantics<parallel>], iteration_bounds = array<i64: 1>, scalar_prefetch = 0 : i64, scratch_operands = 0 : i64, tpu.core_type = #tpu.core_type<tc>, window_params = [{transform_indices = @transform_0, window_bounds = array<i64: 8, 128>}, {pipeline_mode = #tpu.pipeline_mode<synchronous>, transform_indices = @transform_1, window_bounds = array<i64: 32, 8>}, {pipeline_mode = #tpu.pipeline_mode<synchronous>, transform_indices = @transform_2, window_bounds = array<i64: 32, 1>}, {pipeline_mode = #tpu.pipeline_mode<synchronous>, transform_indices = @transform_3, window_bounds = array<i64: 32, 1>}, {transform_indices = @transform_4, window_bounds = array<i64: 1>}, {transform_indices = @transform_5, window_bounds = array<i64: 1, 128>}]} {
    %c0 = arith.constant 0 : index
    %c0_0 = arith.constant 0 : index
    %0 = vector.load %arg2[%c0, %c0_0] : memref<32x8xf32, #tpu.memory_space<vmem>>, vector<32x8xf32>
    %c0_1 = arith.constant 0 : index
    %c0_2 = arith.constant 0 : index
    %1 = vector.load %arg1[%c0_1, %c0_2] : memref<8x128xf32, #tpu.memory_space<vmem>>, vector<8x128xf32>
    %cst = arith.constant dense<0.000000e+00> : vector<32x128xf32>
    %2 = tpu.matmul %0, %1, %cst {dimension_numbers = #tpu.dot_dimension_numbers<[1], [0], [0], [1], [0, 0, 1, 1], [], []>} : vector<32x8xf32>, vector<8x128xf32>, vector<32x128xf32> -> vector<32x128xf32>
    %c0_3 = arith.constant 0 : index
    %c0_4 = arith.constant 0 : index
    %3 = vector.load %arg3[%c0_3, %c0_4] : memref<32x1xf32, #tpu.memory_space<vmem>>, vector<32x1xf32>
    %4 = vector.broadcast %3 : vector<32x1xf32> to vector<32x128xf32>
    %5 = arith.addf %2, %4 : vector<32x128xf32>
    %cst_5 = arith.constant 0.000000e+00 : f32
    %6 = vector.broadcast %cst_5 : f32 to vector<32x128xf32>
    %7 = arith.maximumf %5, %6 : vector<32x128xf32>
    %c0_6 = arith.constant 0 : index
    %c0_7 = arith.constant 0 : index
    %8 = vector.load %arg4[%c0_6, %c0_7] : memref<32x1xf32, #tpu.memory_space<vmem>>, vector<32x1xf32>
    %9 = vector.broadcast %8 : vector<32x1xf32> to vector<32x128xf32>
    %10 = arith.mulf %9, %7 : vector<32x128xf32>
    %cst_8 = arith.constant dense<0.000000e+00> : vector<128xf32>
    %11 = vector.multi_reduction <add>, %10, %cst_8 [0] : vector<32x128xf32> to vector<128xf32>
    %12 = vector.shape_cast %11 : vector<128xf32> to vector<1x128xf32>
    %c0_9 = arith.constant 0 : index
    %13 = memref.load %arg5[%c0_9] : memref<1xf32, #tpu.memory_space<smem>>
    %14 = vector.broadcast %13 : f32 to vector<1x128xf32>
    %15 = arith.addf %12, %14 : vector<1x128xf32>
    %c0_10 = arith.constant 0 : index
    %c0_11 = arith.constant 0 : index
    %16 = vector.load %arg6[%c0_10, %c0_11] : memref<1x128xf32, #tpu.memory_space<vmem>>, vector<1x128xf32>
    tpu.vector_store %arg6[%c0_10, %c0_11], %15 {strides = array<i32>} : memref<1x128xf32, #tpu.memory_space<vmem>>, vector<1x128xf32>,
    return
  }
  func.func @transform_0(%arg0: i32) -> (i32, i32) {
    %c0_i32 = arith.constant 0 : i32
    %c0_i32_0 = arith.constant 0 : i32
    return %c0_i32, %arg0 : i32, i32
  }
  func.func @transform_1(%arg0: i32) -> (i32, i32) {
    %c0_i32 = arith.constant 0 : i32
    %c0_i32_0 = arith.constant 0 : i32
    %c0_i32_1 = arith.constant 0 : i32
    return %c0_i32, %c0_i32_0 : i32, i32
  }
  func.func @transform_2(%arg0: i32) -> (i32, i32) {
    %c0_i32 = arith.constant 0 : i32
    %c0_i32_0 = arith.constant 0 : i32
    %c0_i32_1 = arith.constant 0 : i32
    return %c0_i32, %c0_i32_0 : i32, i32
  }
  func.func @transform_3(%arg0: i32) -> (i32, i32) {
    %c0_i32 = arith.constant 0 : i32
    %c0_i32_0 = arith.constant 0 : i32
    %c0_i32_1 = arith.constant 0 : i32
    return %c0_i32, %c0_i32_0 : i32, i32
  }
  func.func @transform_4(%arg0: i32) -> i32 {
    %c0_i32 = arith.constant 0 : i32
    %c0_i32_0 = arith.constant 0 : i32
    return %c0_i32 : i32
  }
  func.func @transform_5(%arg0: i32) -> (i32, i32) {
    %c0_i32 = arith.constant 0 : i32
    %c0_i32_0 = arith.constant 0 : i32
    return %c0_i32, %arg0 : i32, i32
  }
}

</mosaic_0001>

<llo_original>
// kernel: bpnn_forward.1
$region0: #{bpnn_forward.1}
  #allocation0 [shape = 'u32[]', space=smem, size = 0x4, offset = 0x4, fixed_abs, tag = 'smem constant byte address 0x4 - core index']
  #allocation1 [shape = 'u32[144,128]{1,0:T(1,128)}', space=vmem, size = 0x12000, scoped, tag = 'internal scratch']
  #allocation2 [shape = 'f32[1]{0:T(128)S(6)}', space=smem, size = 0x200, scoped, tag = 'scoped memory for bpnn_forward.1']
  %s0 = inlined_call_operand.vmem [shape: f32[8,128], index: 0, kind: input, shape index: {}]
  %s1 = inlined_call_operand.vmem [shape: f32[32,8], index: 1, kind: input, shape index: {}]
  %s2 = inlined_call_operand.vmem [shape: f32[32,1], index: 2, kind: input, shape index: {}]
  %s3 = inlined_call_operand.vmem [shape: f32[32,1], index: 3, kind: input, shape index: {}]
  %s4 = inlined_call_operand.<no memory space> [shape: f32[1], index: 4, kind: input, shape index: {}]
  %s5 = inlined_call_operand.vmem [shape: f32[1,128], index: 5, kind: output, shape index: {}]
  %s6 = sld [smem:[#allocation0]]
  $region30: #{bpnn_forward.1} parent=0
    _
  %s8 = ssub.s32 1, %s6
  %s9 = scalar_select 0, %s8, %s6
  %10 = sst [smem:[#allocation2]] %s4
  // Predicated region
  $region2: #{bpnn_forward.1} parent=0 // pred_check
    _
  $region3: #{bpnn_forward.1} parent=0 // pred_check_branch
    %12 = sbr.rel (0) target = $region5
  $region4: #{bpnn_forward.1} parent=0 // pred_region
    _
  $region5: #{bpnn_forward.1} parent=0 // pred_fallthru
    _
  // Predicated region
  $region6: #{bpnn_forward.1} parent=0 // pred_check
    _
  $region7: #{bpnn_forward.1} parent=0 // pred_check_branch
    %14 = sbr.rel (0) target = $region9
  $region8: #{bpnn_forward.1} parent=0 // pred_region
    _
  $region9: #{bpnn_forward.1} parent=0 // pred_fallthru
    _
  // Predicated region
  $region10: #{bpnn_forward.1} parent=0 // pred_check
    _
  $region11: #{bpnn_forward.1} parent=0 // pred_check_branch
    %16 = sbr.rel (0) target = $region13
  $region12: #{bpnn_forward.1} parent=0 // pred_region
    _
  $region13: #{bpnn_forward.1} parent=0 // pred_fallthru
    _
  // Predicated region
  $region14: #{bpnn_forward.1} parent=0 // pred_check
    _
  $region15: #{bpnn_forward.1} parent=0 // pred_check_branch
    %18 = sbr.rel (0) target = $region17
  $region16: #{bpnn_forward.1} parent=0 // pred_region
    _
  $region17: #{bpnn_forward.1} parent=0 // pred_fallthru
    _
  // Predicated region
  $region18: #{bpnn_forward.1} parent=0 // pred_check
    _
  $region19: #{bpnn_forward.1} parent=0 // pred_check_branch
    %20 = sbr.rel (0) target = $region21
  $region20: #{bpnn_forward.1} parent=0 // pred_region
    _
  $region21: #{bpnn_forward.1} parent=0 // pred_fallthru
    _
  %v21 = vld [vmem:[%s1] sm:$0xff]
  %v22 = vld [vmem:[%s1 + $0x8] sm:$0xff]
  %v23 = vld [vmem:[%s1 + $0x10] sm:$0xff]
  %v24 = vld [vmem:[%s1 + $0x18] sm:$0xff]
  %v25 = vld [vmem:[%s0] sm:$0xff]
  %v26 = vld [vmem:[%s2] sm:$0xff]
  %v27 = vld [vmem:[%s2 + $0x8] sm:$0xff]
  %v28 = vld [vmem:[%s2 + $0x10] sm:$0xff]
  %v29 = vld [vmem:[%s2 + $0x18] sm:$0xff]
  %31 = vset.pattern.permute.xlu0 0
  %32 = vperm.xlu0 %31, %v26
  %v33 = vpop.permute.xlu0 %32
  %36 = vset.pattern.permute.xlu0 0
  %37 = vperm.xlu0 %36, %v27
  %v38 = vpop.permute.xlu0 %37
  %41 = vset.pattern.permute.xlu0 0
  %42 = vperm.xlu0 %41, %v28
  %v43 = vpop.permute.xlu0 %42
  %46 = vset.pattern.permute.xlu0 0
  %47 = vperm.xlu0 %46, %v29
  %v48 = vpop.permute.xlu0 %47
  %vm50 = vcmask 64512
  %v52 = vsel %vm50, %v21, 0
  %v55 = vsel %vm50, %v22, 0
  %v58 = vsel %vm50, %v23, 0
  %v61 = vsel %vm50, %v24, 0
  %63 = vmatprep.subr.mxu0 0.0
  %64 = vmatpush1.msra.mxu0 %v25
  %65 = vmatprep.subr.mxu0 0.0
  %66 = vmatpush1.msra.mxu0 0.0
  %67 = vmatprep.subr.mxu0 0.0
  %68 = vmatpush1.msra.mxu0 0.0
  %69 = vmatprep.subr.mxu0 0.0
  %70 = vmatpush1.msra.mxu0 0.0
  %71 = vmatprep.subr.mxu0 0.0
  %72 = vmatpush1.msra.mxu0 0.0
  %73 = vmatprep.subr.mxu0 0.0
  %74 = vmatpush1.msra.mxu0 0.0
  %75 = vmatprep.subr.mxu0 0.0
  %76 = vmatpush1.msra.mxu0 0.0
  %77 = vmatprep.subr.mxu0 0.0
  %78 = vmatpush1.msra.mxu0 0.0
  %79 = vmatprep.subr.mxu0 0.0
  %80 = vmatpush1.msra.mxu0 0.0
  %81 = vmatprep.subr.mxu0 0.0
  %82 = vmatpush1.msra.mxu0 0.0
  %83 = vmatprep.subr.mxu0 0.0
  %84 = vmatpush1.msra.mxu0 0.0
  %85 = vmatprep.subr.mxu0 0.0
  %86 = vmatpush1.msra.mxu0 0.0
  %87 = vmatprep.subr.mxu0 0.0
  %88 = vmatpush1.msra.mxu0 0.0
  %89 = vmatprep.subr.mxu0 0.0
  %90 = vmatpush1.msra.mxu0 0.0
  %91 = vmatprep.subr.mxu0 0.0
  %92 = vmatpush1.msra.mxu0 0.0
  %93 = vmatprep.subr.mxu0 0.0
  %94 = vmatpush1.msra.mxu0 0.0
  %95 = vmatprep.subr.mxu0 0.0
  %96 = vmatpush1.msra.mxu0 0.0
  %97 = vmatprep.subr.mxu0 0.0
  %98 = vmatpush1.msra.mxu0 0.0
  %99 = vmatprep.subr.mxu0 0.0
  %100 = vmatpush1.msra.mxu0 0.0
  %101 = vmatprep.subr.mxu0 0.0
  %102 = vmatpush1.msra.mxu0 0.0
  %103 = vmatprep.subr.mxu0 0.0
  %104 = vmatpush1.msra.mxu0 0.0
  %105 = vmatprep.subr.mxu0 0.0
  %106 = vmatpush1.msra.mxu0 0.0
  %107 = vmatprep.subr.mxu0 0.0
  %108 = vmatpush1.msra.mxu0 0.0
  %109 = vmatprep.subr.mxu0 0.0
  %110 = vmatpush1.msra.mxu0 0.0
  %111 = vmatprep.subr.mxu0 0.0
  %112 = vmatpush1.msra.mxu0 0.0
  %113 = vmatprep.subr.mxu0 0.0
  %114 = vmatpush1.msra.mxu0 0.0
  %115 = vmatprep.subr.mxu0 0.0
  %116 = vmatpush1.msra.mxu0 0.0
  %117 = vmatprep.subr.mxu0 0.0
  %118 = vmatpush1.msra.mxu0 0.0
  %119 = vmatprep.subr.mxu0 0.0
  %120 = vmatpush1.msra.mxu0 0.0
  %121 = vmatprep.subr.mxu0 0.0
  %122 = vmatpush1.msra.mxu0 0.0
  %123 = vmatprep.subr.mxu0 0.0
  %124 = vmatpush1.msra.mxu0 0.0
  %125 = vmatprep.subr.mxu0 0.0
  %126 = vmatpush1.msra.mxu0 0.0
  %127 = vmatprep.mubr.f32.mxu0 0.0
  %128 = vmatmul.mubr.f32.gmra.mrb[0].mxu0 %v52
  %v129 = vpop.f32.mrb[0].mxu0
  %v130 = vadd.f32 %v33, %v129
  %v131 = vpop.f32.mrb[0].mxu0
  %132 = vmatprep.mubr.f32.mxu0 0.0
  %133 = vmatmul.mubr.f32.gmra.mrb[0].mxu0 %v55
  %v134 = vpop.f32.mrb[0].mxu0
  %v135 = vadd.f32 %v38, %v134
  %v136 = vpop.f32.mrb[0].mxu0
  %137 = vmatprep.mubr.f32.mxu0 0.0
  %138 = vmatmul.mubr.f32.gmra.mrb[0].mxu0 %v58
  %v139 = vpop.f32.mrb[0].mxu0
  %v140 = vadd.f32 %v43, %v139
  %v141 = vpop.f32.mrb[0].mxu0
  %142 = vmatprep.mubr.f32.mxu0 0.0
  %143 = vmatmul.mubr.f32.gmra.mrb[0].mxu0 %v61
  %v144 = vpop.f32.mrb[0].mxu0
  %v145 = vadd.f32 %v48, %v144
  %v146 = vpop.f32.mrb[0].mxu0
  %147 = vdwg.mxu0
  %v148 = vmax.f32 %v130, 0.0
  %v149 = vmax.f32 %v135, 0.0
  %v150 = vmax.f32 %v140, 0.0
  %v151 = vmax.f32 %v145, 0.0
  %v152 = vld [vmem:[%s3] sm:$0xff]
  %v153 = vld [vmem:[%s3 + $0x8] sm:$0xff]
  %v154 = vld [vmem:[%s3 + $0x10] sm:$0xff]
  %v155 = vld [vmem:[%s3 + $0x18] sm:$0xff]
  %157 = vset.pattern.permute.xlu0 0
  %158 = vperm.xlu0 %157, %v152
  %v159 = vpop.permute.xlu0 %158
  %162 = vset.pattern.permute.xlu0 0
  %163 = vperm.xlu0 %162, %v153
  %v164 = vpop.permute.xlu0 %163
  %167 = vset.pattern.permute.xlu0 0
  %168 = vperm.xlu0 %167, %v154
  %v169 = vpop.permute.xlu0 %168
  %172 = vset.pattern.permute.xlu0 0
  %173 = vperm.xlu0 %172, %v155
  %v174 = vpop.permute.xlu0 %173
  %v176 = vmul.f32 %v159, %v148
  %v177 = vmul.f32 %v164, %v149
  %v178 = vmul.f32 %v169, %v150
  %v179 = vmul.f32 %v174, %v151
  %v180 = vadd.f32 %v176, %v177
  %v181 = vadd.f32 %v180, %v178
  %v182 = vadd.f32 %v181, %v179
  %v183 = vrot.slane %v182, 4
  %v184 = vadd.f32 %v182, %v183
  %v185 = vrot.slane %v184, 2
  %v186 = vadd.f32 %v184, %v185
  %v187 = vrot.slane %v186, 1
  %v188 = vadd.f32 %v186, %v187
  %s189 = sld [smem:[#allocation2]]
  %v190 = vstv %s189
  %v191 = vadd.f32 %v188, %v190
  %192 = vst [vmem:[%s5] sm:$0x1] %v191
  // Predicated region
  $region22: #{bpnn_forward.1} parent=0 // pred_check
    _
  $region23: #{bpnn_forward.1} parent=0 // pred_check_branch
    %194 = sbr.rel (0) target = $region25
  $region24: #{bpnn_forward.1} parent=0 // pred_region
    _
  $region25: #{bpnn_forward.1} parent=0 // pred_fallthru
    _
  // Predicated region
  $region26: #{bpnn_forward.1} parent=0 // pred_check
    _
  $region27: #{bpnn_forward.1} parent=0 // pred_check_branch
    %196 = sbr.rel (0) target = $region29
  $region28: #{bpnn_forward.1} parent=0 // pred_region
    _
  $region29: #{bpnn_forward.1} parent=0 // pred_fallthru
    _

</llo_original>
